<compile_context>
chip_gen: v7x
topology: tpu7x:2x2x1
jax: 0.10.0
libtpu: 0.0.40
codegen_flags: <defaults>
</compile_context>

<pallas_src>
import functools

import jax
import jax.numpy as jnp
from jax.experimental import pallas as pl
from jax.experimental.pallas import tpu as pltpu


def _round_up(v, m):
    return (v + m - 1) // m * m


def _vmem_capacity_bytes():
    """Physical VMEM of the local TPU (128 MiB on v5e/v6e, 64 MiB per TensorCore on v7x)."""
    try:
        return int(pltpu.get_tpu_info().vmem_capacity_bytes)
    except Exception:                      # emulator / unknown chip -> conservative default
        return 64 << 20


def _device_is_v7():
    try:
        return "v7" in jax.devices()[0].device_kind.lower()
    except Exception:
        return False


def _edge_spec(block_shape, index_map, deep_buffer):
    """Streamed-operand BlockSpec; on v7x request 3-deep pipelining to hide DMA latency jitter."""
    if deep_buffer:
        try:
            return pl.BlockSpec(block_shape, index_map, pipeline_mode=pl.Buffered(3))
        except TypeError:                  # older jax without pipeline_mode support
            pass
    return pl.BlockSpec(block_shape, index_map)


def _gine_kernel(eps_ref,              # SMEM (1,)        GIN epsilon (train_eps)
                 x_ref,                # VMEM (Np, Dp)    node features, f32 (residual path)
                 soh_ref,              # VMEM (TE, W)     fused src/edge-attr one-hot, bf16
                 dohT_ref,             # VMEM (Np, TE)    transposed dst one-hot, bf16
                 gmat_ref,             # VMEM (W, Dp)     [x_bf16 ; edge-embedding] gather matrix
                 w1_ref,               # VMEM (Dp, Hp)    Linear1 weight, bf16
                 gamma_ref, beta_ref,  # VMEM (1, Hp)     BatchNorm affine, f32
                 w2_ref,               # VMEM (Hp, Hp)    Linear2 weight, bf16
                 b2_ref,               # VMEM (1, Hp)     Linear2 bias, f32
                 out_ref,              # VMEM (Np, Hp)    output, f32
                 agg_ref,              # VMEM scratch (Np, Dp) f32 aggregation accumulator
                 *, n_true, n_pad):
    et = pl.program_id(0)

    @pl.when(et == 0)
    def _init():
        agg_ref[...] = jnp.zeros_like(agg_ref)

    # Fused gather + embedding lookup: one bf16 MXU matmul (f32 accumulation) yields
    # x[src] + emb[edge_attr] per edge (each one-hot row has a 1 in the node-column block and a
    # 1 in the edge-attr-column block; padded edges are all-zero rows).
    pre = jnp.dot(soh_ref[...], gmat_ref[...], preferred_element_type=jnp.float32)   # (TE, Dp)
    msg = jnp.maximum(pre, 0.0)                                                      # ReLU, f32
    # Scatter-add with the pre-transposed dst one-hot: standard-orientation matmul, pure MXU
    # (no in-kernel vxpose), accumulating f32 into the resident per-node accumulator.
    agg_ref[...] += jnp.dot(dohT_ref[...], msg.astype(jnp.bfloat16),
                            preferred_element_type=jnp.float32)                      # (Np, Dp)

    # ---- finalize on the last edge tile: residual + MLP with training-mode BatchNorm ---------
    @pl.when(et == pl.num_programs(0) - 1)
    def _finalize():
        h = (1.0 + eps_ref[0]) * x_ref[...] + agg_ref[...]
        # Linear1 — b1 omitted: training-mode BatchNorm mean subtraction cancels it exactly.
        h1 = jnp.dot(h.astype(jnp.bfloat16), w1_ref[...],
                     preferred_element_type=jnp.float32)                             # (Np, Hp)
        # Centered two-pass batch statistics.  Padded node rows of h1 are exactly zero, so the
        # centered sum of squares over-counts (Np - N) * mean^2; subtract it for the exact
        # training-mode (biased) batch variance.
        inv_n = 1.0 / n_true
        mean = jnp.sum(h1, axis=0, keepdims=True) * inv_n
        d = h1 - mean
        var = jnp.maximum((jnp.sum(d * d, axis=0, keepdims=True)
                           - n_pad * mean * mean) * inv_n, 0.0)
        scale = gamma_ref[...] * jax.lax.rsqrt(var + 1e-5)                           # gamma folded
        h1 = jnp.maximum(d * scale + beta_ref[...], 0.0)                             # BN + ReLU
        out_ref[...] = jnp.dot(h1.astype(jnp.bfloat16), w2_ref[...],
                               preferred_element_type=jnp.float32) + b2_ref[...]


@functools.partial(jax.jit, static_argnames=("edge_tile",))
def gine_layer_forward(params, x, edge_index, edge_attr, *, edge_tile=None):
    """x: (N, in_dim) f32; edge_index: (2, E) i32; edge_attr: (E,) i32  ->  (N, emb_dim) f32."""
    n, din = x.shape
    e = edge_index.shape[1]
    k = params["emb_w"].shape[0]
    h = params["w1"].shape[1]
    bf = jnp.bfloat16

    LANE, SUB = 128, 16                          # lane width / bf16 sublane tile
    d_p = _round_up(din, LANE)                   # lane-dense feature dim
    h_p = _round_up(h, LANE)                     # lane-dense output dim (unmasked vst)
    n_p = _round_up(n, SUB)                      # node axis is a sublane axis everywhere
    w = _round_up(n + k, LANE)                   # fused lane axis: node cols ++ edge-attr cols

    # ---- per-generation VMEM budget and edge-tile selection ------------------------------
    is_v7 = _device_is_v7()
    vmem_cap = _vmem_capacity_bytes()
    vmem_limit = min(int(vmem_cap * 4 // 5), 100 << 20)   # ~100 MiB v5e/v6e, ~51 MiB v7x
    n_buf = 3 if is_v7 else 2                             # streamed-tile pipeline depth
    resident = (2 * n_p * d_p * 4                         # x (f32) + agg scratch (f32)
                + w * d_p * 2                             # gather matrix (bf16)
                + d_p * h_p * 2 + h_p * h_p * 2           # w1, w2 (bf16)
                + n_p * h_p * 4                           # output block (f32)
                + 8 * h_p * 4)                            # BN affine + bias (f32)
    stream_budget = max(vmem_limit - resident - (8 << 20), 0)
    per_edge = n_buf * (w + n_p) * 2                      # bytes/edge of pipelined one-hot tiles
    if edge_tile is None:
        te = 256                                          # MXU-friendly minimum (2x256x256)
        for cand in (2048, 1024, 512, 256):
            if cand * per_edge <= stream_budget:
                te = cand
                break
        te = min(te, _round_up(e, 256))
    else:
        # Explicit override (testing): lane axis of the transposed dst one-hot -> 128 granularity.
        te = min(_round_up(edge_tile, LANE), _round_up(e, LANE))
    e_p = _round_up(e, te)

    # ---- host-side operand construction (padded indices use -1 -> all-zero one-hot rows) --
    pad_e = lambda v: jnp.full((e_p,), -1, jnp.int32).at[:e].set(v.astype(jnp.int32))
    src_i = pad_e(edge_index[0])
    dst_i = pad_e(edge_index[1])
    ea_i = pad_e(edge_attr)
    ea_col = jnp.where(ea_i >= 0, ea_i + n, -1)

    # Fused (src, edge_attr) one-hot: 0/1 values are exact in bf16.
    src_ea_oh = (jax.nn.one_hot(src_i, w, dtype=bf)
                 + jax.nn.one_hot(ea_col, w, dtype=bf))                      # (Ep, W)
    # Destination one-hot built already transposed -> in-kernel scatter is a plain matmul.
    dst_ohT = (jnp.arange(n_p, dtype=jnp.int32)[:, None]
               == dst_i[None, :]).astype(bf)                                 # (Np, Ep)

    # Gather matrix: bf16 x stacked over the bf16 embedding table on the shared W axis.
    gmat = jnp.zeros((w, d_p), bf)
    gmat = gmat.at[:n, :din].set(x.astype(bf))
    gmat = gmat.at[n:n + k, :din].set(params["emb_w"].astype(bf))

    xp = jnp.zeros((n_p, d_p), jnp.float32).at[:n, :din].set(x)              # f32 residual path
    w1p = jnp.zeros((d_p, h_p), bf).at[:din, :h].set(params["w1"].astype(bf))
    w2p = jnp.zeros((h_p, h_p), bf).at[:h, :h].set(params["w2"].astype(bf))
    gp = jnp.zeros((1, h_p), jnp.float32).at[:, :h].set(params["gamma"])
    bp = jnp.zeros((1, h_p), jnp.float32).at[:, :h].set(params["beta"])
    b2p = jnp.zeros((1, h_p), jnp.float32).at[:, :h].set(params["b2"])
    # params["b1"] intentionally unused: training-mode BatchNorm cancels it exactly.

    grid = (e_p // te,)
    flops = int(2 * e_p * w * d_p            # fused gather + embedding matmul
                + 2 * e_p * n_p * d_p        # scatter matmul
                + 2 * n_p * d_p * h_p        # Linear1
                + 2 * n_p * h_p * h_p)       # Linear2
    bytes_accessed = int(e_p * w * 2 + n_p * e_p * 2
                         + n_p * d_p * 4 + w * d_p * 2
                         + d_p * h_p * 2 + h_p * h_p * 2
                         + 3 * h_p * 4 + n_p * h_p * 4)

    out_p = pl.pallas_call(
        functools.partial(_gine_kernel, n_true=float(n), n_pad=float(n_p - n)),
        out_shape=jax.ShapeDtypeStruct((n_p, h_p), jnp.float32),
        grid=grid,
        in_specs=[
            pl.BlockSpec(memory_space=pltpu.MemorySpace.SMEM),           # eps (scalar)
            pl.BlockSpec((n_p, d_p), lambda t: (0, 0)),                  # x (resident, f32)
            _edge_spec((te, w), lambda t: (t, 0), is_v7),                # fused src/attr one-hot
            _edge_spec((n_p, te), lambda t: (0, t), is_v7),              # transposed dst one-hot
            pl.BlockSpec((w, d_p), lambda t: (0, 0)),                    # gather matrix
            pl.BlockSpec((d_p, h_p), lambda t: (0, 0)),                  # w1
            pl.BlockSpec((1, h_p), lambda t: (0, 0)),                    # gamma
            pl.BlockSpec((1, h_p), lambda t: (0, 0)),                    # beta
            pl.BlockSpec((h_p, h_p), lambda t: (0, 0)),                  # w2
            pl.BlockSpec((1, h_p), lambda t: (0, 0)),                    # b2
        ],
        out_specs=pl.BlockSpec((n_p, h_p), lambda t: (0, 0)),            # resident output block
        scratch_shapes=[pltpu.VMEM((n_p, d_p), jnp.float32)],            # aggregation accumulator
        compiler_params=pltpu.CompilerParams(
            dimension_semantics=("arbitrary",),                          # edge axis is a reduction
            vmem_limit_bytes=int(vmem_limit),
        ),
        cost_estimate=pl.CostEstimate(flops=flops, transcendentals=int(h_p),
                                      bytes_accessed=bytes_accessed),
    )(params["eps"], xp, src_ea_oh, dst_ohT, gmat, w1p, gp, bp, w2p, b2p)

    return out_p[:n, :h]


def _ref_f32(params, x, edge_index, edge_attr):
    """Pure-f32 JAX reference of the PyTorch module (training-mode BN, includes b1)."""
    edge_feat = params["emb_w"][edge_attr]
    msg = jnp.maximum(x[edge_index[0]] + edge_feat, 0.0)
    agg = jnp.zeros_like(x).at[edge_index[1]].add(msg)
    h = (1.0 + params["eps"][0]) * x + agg
    h1 = h @ params["w1"] + params["b1"]
    mean = jnp.mean(h1, axis=0, keepdims=True)
    var = jnp.mean((h1 - mean) ** 2, axis=0, keepdims=True)
    h1 = (h1 - mean) / jnp.sqrt(var + 1e-5) * params["gamma"] + params["beta"]
    h1 = jnp.maximum(h1, 0.0)
    return h1 @ params["w2"] + params["b2"]


def _ref_mixed(params, x, edge_index, edge_attr):
    """Reference applying the kernel's bf16-operand / f32-accumulate policy (tight check)."""
    bf, f32 = jnp.bfloat16, jnp.float32
    x_bf = x.astype(bf).astype(f32)
    emb_bf = params["emb_w"].astype(bf).astype(f32)
    msg = jnp.maximum(x_bf[edge_index[0]] + emb_bf[edge_attr], 0.0)
    msg_bf = msg.astype(bf).astype(f32)
    agg = jnp.zeros_like(x).at[edge_index[1]].add(msg_bf)
    h = (1.0 + params["eps"][0]) * x + agg
    h1 = jnp.dot(h.astype(bf), params["w1"].astype(bf), preferred_element_type=f32)   # no b1
    mean = jnp.mean(h1, axis=0, keepdims=True)
    var = jnp.mean((h1 - mean) ** 2, axis=0, keepdims=True)
    h1 = (h1 - mean) * (params["gamma"] * jax.lax.rsqrt(var + 1e-5)) + params["beta"]
    h1 = jnp.maximum(h1, 0.0)
    return jnp.dot(h1.astype(bf), params["w2"].astype(bf),
                   preferred_element_type=f32) + params["b2"]


def init_params(key, in_dim, emb_dim, num_edge_emb):
    ks = jax.random.split(key, 6)
    # Xavier-uniform embedding (matches nn.init.xavier_uniform_)
    lim_e = (6.0 / (num_edge_emb + in_dim)) ** 0.5
    emb_w = jax.random.uniform(ks[0], (num_edge_emb, in_dim), jnp.float32, -lim_e, lim_e)
    # Linear layers (synthetic init; stored as (in, out) so the kernel does x @ W)
    lim1 = (1.0 / in_dim) ** 0.5
    w1 = jax.random.uniform(ks[1], (in_dim, emb_dim), jnp.float32, -lim1, lim1)
    b1 = jax.random.uniform(ks[2], (1, emb_dim), jnp.float32, -lim1, lim1)
    lim2 = (1.0 / emb_dim) ** 0.5
    w2 = jax.random.uniform(ks[3], (emb_dim, emb_dim), jnp.float32, -lim2, lim2)
    b2 = jax.random.uniform(ks[4], (1, emb_dim), jnp.float32, -lim2, lim2)
    return {
        "eps": jnp.zeros((1,), jnp.float32),           # GINEConv train_eps init = 0.0
        "emb_w": emb_w,
        "w1": w1, "b1": b1,                            # b1 kept for the f32 reference only
        "gamma": jnp.ones((1, emb_dim), jnp.float32),  # BatchNorm1d affine init
        "beta": jnp.zeros((1, emb_dim), jnp.float32),
        "w2": w2, "b2": b2,
    }


if __name__ == "__main__":
    in_dim, emb_dim, num_edge_emb = 8, 32, 4
    num_nodes, num_edges = 16, 200

    key = jax.random.PRNGKey(0)
    k_p, k_x, k_src, k_dst, k_ea = jax.random.split(key, 5)

    params = init_params(k_p, in_dim, emb_dim, num_edge_emb)
    x = jax.random.normal(k_x, (num_nodes, in_dim), jnp.float32)
    edge_index = jnp.stack([
        jax.random.randint(k_src, (num_edges,), 0, num_nodes),
        jax.random.randint(k_dst, (num_edges,), 0, num_nodes),
    ]).astype(jnp.int32)
    edge_attr = jax.random.randint(k_ea, (num_edges,), 0, num_edge_emb).astype(jnp.int32)

    # Explicit small tile (128) -> 2 grid steps over the padded edge axis (exercises the
    # accumulator pipeline); default derives the largest MXU/VMEM-friendly tile automatically.
    out_tiled = jax.block_until_ready(
        gine_layer_forward(params, x, edge_index, edge_attr, edge_tile=128))
    out_auto = jax.block_until_ready(
        gine_layer_forward(params, x, edge_index, edge_attr))
    assert out_tiled.shape == (num_nodes, emb_dim)
    assert out_auto.shape == (num_nodes, emb_dim)
    assert jnp.allclose(out_tiled, out_auto, atol=2e-3, rtol=2e-3), "tile-size dependence"

    # Tight check vs a reference applying the same bf16-operand / f32-accumulate policy.
    ref_mp = _ref_mixed(params, x, edge_index, edge_attr)
    assert jnp.allclose(out_tiled, ref_mp, atol=5e-3, rtol=5e-3), "mismatch vs mixed-precision ref"

    # Module-semantics check vs the pure-f32 reference (bf16 MXU inputs widen the error slightly).
    ref_fp = _ref_f32(params, x, edge_index, edge_attr)
    rel = float(jnp.linalg.norm(out_tiled - ref_fp) / jnp.linalg.norm(ref_fp))
    assert rel < 3e-2, f"deviation vs f32 module reference too large: {rel}"

    print("KERNEL_OK")
</pallas_src>

<mosaic_0001>
module attributes {stable_mosaic.version = 11 : i64} {
  func.func @_gine_kernel(%arg0: i32, %arg1: memref<1xf32, #tpu.memory_space<smem>>, %arg2: memref<16x128xf32, #tpu.memory_space<vmem>>, %arg3: memref<128x128xbf16, #tpu.memory_space<vmem>>, %arg4: memref<16x128xbf16, #tpu.memory_space<vmem>>, %arg5: memref<128x128xbf16, #tpu.memory_space<vmem>>, %arg6: memref<128x128xbf16, #tpu.memory_space<vmem>>, %arg7: memref<1x128xf32, #tpu.memory_space<vmem>>, %arg8: memref<1x128xf32, #tpu.memory_space<vmem>>, %arg9: memref<128x128xbf16, #tpu.memory_space<vmem>>, %arg10: memref<1x128xf32, #tpu.memory_space<vmem>>, %arg11: memref<16x128xf32, #tpu.memory_space<vmem>>, %arg12: memref<16x128xf32, #tpu.memory_space<vmem>>) attributes {dimension_semantics = [#tpu.dimension_semantics<arbitrary>], iteration_bounds = array<i64: 2>, scalar_prefetch = 0 : i64, scratch_operands = 1 : i64, tpu.core_type = #tpu.core_type<tc>, window_params = [{transform_indices = @transform_0, window_bounds = array<i64: 1>}, {pipeline_mode = #tpu.pipeline_mode<synchronous>, transform_indices = @transform_1, window_bounds = array<i64: 16, 128>}, {transform_indices = @transform_2, window_bounds = array<i64: 128, 128>}, {transform_indices = @transform_3, window_bounds = array<i64: 16, 128>}, {pipeline_mode = #tpu.pipeline_mode<synchronous>, transform_indices = @transform_4, window_bounds = array<i64: 128, 128>}, {pipeline_mode = #tpu.pipeline_mode<synchronous>, transform_indices = @transform_5, window_bounds = array<i64: 128, 128>}, {pipeline_mode = #tpu.pipeline_mode<synchronous>, transform_indices = @transform_6, window_bounds = array<i64: 1, 128>}, {pipeline_mode = #tpu.pipeline_mode<synchronous>, transform_indices = @transform_7, window_bounds = array<i64: 1, 128>}, {pipeline_mode = #tpu.pipeline_mode<synchronous>, transform_indices = @transform_8, window_bounds = array<i64: 128, 128>}, {pipeline_mode = #tpu.pipeline_mode<synchronous>, transform_indices = @transform_9, window_bounds = array<i64: 1, 128>}, {pipeline_mode = #tpu.pipeline_mode<synchronous>, transform_indices = @transform_10, window_bounds = array<i64: 16, 128>}]} {
    %c0_i32 = arith.constant 0 : i32
    %0 = arith.cmpi eq, %arg0, %c0_i32 : i32
    %1 = arith.extui %0 : i1 to i32
    %c0_i32_0 = arith.constant 0 : i32
    %2 = arith.cmpi ne, %1, %c0_i32_0 : i32
    scf.if %2 {
      %cst_13 = arith.constant 0.000000e+00 : f32
      %17 = vector.broadcast %cst_13 : f32 to vector<16x128xf32>
      %c0_14 = arith.constant 0 : index
      %c0_15 = arith.constant 0 : index
      %18 = vector.load %arg12[%c0_14, %c0_15] : memref<16x128xf32, #tpu.memory_space<vmem>>, vector<16x128xf32>
      tpu.vector_store %arg12[%c0_14, %c0_15], %17 {strides = array<i32>} : memref<16x128xf32, #tpu.memory_space<vmem>>, vector<16x128xf32>,
    } else {
    }
    %c0 = arith.constant 0 : index
    %c0_1 = arith.constant 0 : index
    %3 = vector.load %arg3[%c0, %c0_1] : memref<128x128xbf16, #tpu.memory_space<vmem>>, vector<128x128xbf16>
    %c0_2 = arith.constant 0 : index
    %c0_3 = arith.constant 0 : index
    %4 = vector.load %arg5[%c0_2, %c0_3] : memref<128x128xbf16, #tpu.memory_space<vmem>>, vector<128x128xbf16>
    %cst = arith.constant dense<0.000000e+00> : vector<128x128xf32>
    %5 = tpu.matmul %3, %4, %cst {dimension_numbers = #tpu.dot_dimension_numbers<[1], [0], [0], [1], [0, 0, 1, 1], [], []>} : vector<128x128xbf16>, vector<128x128xbf16>, vector<128x128xf32> -> vector<128x128xf32>
    %cst_4 = arith.constant 0.000000e+00 : f32
    %6 = vector.broadcast %cst_4 : f32 to vector<128x128xf32>
    %7 = arith.maximumf %5, %6 : vector<128x128xf32>
    %c0_5 = arith.constant 0 : index
    %c0_6 = arith.constant 0 : index
    %8 = vector.load %arg12[%c0_5, %c0_6] : memref<16x128xf32, #tpu.memory_space<vmem>>, vector<16x128xf32>
    %c0_7 = arith.constant 0 : index
    %c0_8 = arith.constant 0 : index
    %9 = vector.load %arg4[%c0_7, %c0_8] : memref<16x128xbf16, #tpu.memory_space<vmem>>, vector<16x128xbf16>
    %10 = arith.truncf %7 : vector<128x128xf32> to vector<128x128xbf16>
    %cst_9 = arith.constant dense<0.000000e+00> : vector<16x128xf32>
    %11 = tpu.matmul %9, %10, %cst_9 {dimension_numbers = #tpu.dot_dimension_numbers<[1], [0], [0], [1], [0, 0, 1, 1], [], []>} : vector<16x128xbf16>, vector<128x128xbf16>, vector<16x128xf32> -> vector<16x128xf32>
    %12 = arith.addf %8, %11 : vector<16x128xf32>
    %c0_10 = arith.constant 0 : index
    %c0_11 = arith.constant 0 : index
    %13 = vector.load %arg12[%c0_10, %c0_11] : memref<16x128xf32, #tpu.memory_space<vmem>>, vector<16x128xf32>
    tpu.vector_store %arg12[%c0_10, %c0_11], %12 {strides = array<i32>} : memref<16x128xf32, #tpu.memory_space<vmem>>, vector<16x128xf32>,
    %c1_i32 = arith.constant 1 : i32
    %14 = arith.cmpi eq, %arg0, %c1_i32 : i32
    %15 = arith.extui %14 : i1 to i32
    %c0_i32_12 = arith.constant 0 : i32
    %16 = arith.cmpi ne, %15, %c0_i32_12 : i32
    scf.if %16 {
      %c0_13 = arith.constant 0 : index
      %17 = memref.load %arg1[%c0_13] : memref<1xf32, #tpu.memory_space<smem>>
      %cst_14 = arith.constant 1.000000e+00 : f32
      %18 = arith.addf %cst_14, %17 : f32
      %c0_15 = arith.constant 0 : index
      %c0_16 = arith.constant 0 : index
      %19 = vector.load %arg2[%c0_15, %c0_16] : memref<16x128xf32, #tpu.memory_space<vmem>>, vector<16x128xf32>
      %20 = vector.broadcast %18 : f32 to vector<16x128xf32>
      %21 = arith.mulf %20, %19 : vector<16x128xf32>
      %c0_17 = arith.constant 0 : index
      %c0_18 = arith.constant 0 : index
      %22 = vector.load %arg12[%c0_17, %c0_18] : memref<16x128xf32, #tpu.memory_space<vmem>>, vector<16x128xf32>
      %23 = arith.addf %21, %22 : vector<16x128xf32>
      %24 = arith.truncf %23 : vector<16x128xf32> to vector<16x128xbf16>
      %c0_19 = arith.constant 0 : index
      %c0_20 = arith.constant 0 : index
      %25 = vector.load %arg6[%c0_19, %c0_20] : memref<128x128xbf16, #tpu.memory_space<vmem>>, vector<128x128xbf16>
      %cst_21 = arith.constant dense<0.000000e+00> : vector<16x128xf32>
      %26 = tpu.matmul %24, %25, %cst_21 {dimension_numbers = #tpu.dot_dimension_numbers<[1], [0], [0], [1], [0, 0, 1, 1], [], []>} : vector<16x128xbf16>, vector<128x128xbf16>, vector<16x128xf32> -> vector<16x128xf32>
      %cst_22 = arith.constant dense<0.000000e+00> : vector<128xf32>
      %27 = vector.multi_reduction <add>, %26, %cst_22 [0] : vector<16x128xf32> to vector<128xf32>
      %28 = vector.shape_cast %27 : vector<128xf32> to vector<1x128xf32>
      %cst_23 = arith.constant 6.250000e-02 : f32
      %29 = vector.broadcast %cst_23 : f32 to vector<1x128xf32>
      %30 = arith.mulf %28, %29 : vector<1x128xf32>
      %31 = vector.broadcast %30 : vector<1x128xf32> to vector<16x128xf32>
      %32 = arith.subf %26, %31 : vector<16x128xf32>
      %33 = arith.mulf %32, %32 : vector<16x128xf32>
      %cst_24 = arith.constant dense<0.000000e+00> : vector<128xf32>
      %34 = vector.multi_reduction <add>, %33, %cst_24 [0] : vector<16x128xf32> to vector<128xf32>
      %35 = vector.shape_cast %34 : vector<128xf32> to vector<1x128xf32>
      %cst_25 = arith.constant 0.000000e+00 : f32
      %36 = vector.broadcast %cst_25 : f32 to vector<1x128xf32>
      %37 = arith.mulf %36, %30 : vector<1x128xf32>
      %38 = arith.mulf %37, %30 : vector<1x128xf32>
      %39 = arith.subf %35, %38 : vector<1x128xf32>
      %cst_26 = arith.constant 6.250000e-02 : f32
      %40 = vector.broadcast %cst_26 : f32 to vector<1x128xf32>
      %41 = arith.mulf %39, %40 : vector<1x128xf32>
      %cst_27 = arith.constant 0.000000e+00 : f32
      %42 = vector.broadcast %cst_27 : f32 to vector<1x128xf32>
      %43 = arith.maximumf %41, %42 : vector<1x128xf32>
      %c0_28 = arith.constant 0 : index
      %c0_29 = arith.constant 0 : index
      %44 = vector.load %arg7[%c0_28, %c0_29] : memref<1x128xf32, #tpu.memory_space<vmem>>, vector<1x128xf32>
      %cst_30 = arith.constant 9.99999974E-6 : f32
      %45 = vector.broadcast %cst_30 : f32 to vector<1x128xf32>
      %46 = arith.addf %43, %45 : vector<1x128xf32>
      %47 = math.rsqrt %46 : vector<1x128xf32>
      %48 = arith.mulf %44, %47 : vector<1x128xf32>
      %49 = vector.broadcast %48 : vector<1x128xf32> to vector<16x128xf32>
      %50 = arith.mulf %32, %49 : vector<16x128xf32>
      %c0_31 = arith.constant 0 : index
      %c0_32 = arith.constant 0 : index
      %51 = vector.load %arg8[%c0_31, %c0_32] : memref<1x128xf32, #tpu.memory_space<vmem>>, vector<1x128xf32>
      %52 = vector.broadcast %51 : vector<1x128xf32> to vector<16x128xf32>
      %53 = arith.addf %50, %52 : vector<16x128xf32>
      %cst_33 = arith.constant 0.000000e+00 : f32
      %54 = vector.broadcast %cst_33 : f32 to vector<16x128xf32>
      %55 = arith.maximumf %53, %54 : vector<16x128xf32>
      %56 = arith.truncf %55 : vector<16x128xf32> to vector<16x128xbf16>
      %c0_34 = arith.constant 0 : index
      %c0_35 = arith.constant 0 : index
      %57 = vector.load %arg9[%c0_34, %c0_35] : memref<128x128xbf16, #tpu.memory_space<vmem>>, vector<128x128xbf16>
      %cst_36 = arith.constant dense<0.000000e+00> : vector<16x128xf32>
      %58 = tpu.matmul %56, %57, %cst_36 {dimension_numbers = #tpu.dot_dimension_numbers<[1], [0], [0], [1], [0, 0, 1, 1], [], []>} : vector<16x128xbf16>, vector<128x128xbf16>, vector<16x128xf32> -> vector<16x128xf32>
      %c0_37 = arith.constant 0 : index
      %c0_38 = arith.constant 0 : index
      %59 = vector.load %arg10[%c0_37, %c0_38] : memref<1x128xf32, #tpu.memory_space<vmem>>, vector<1x128xf32>
      %60 = vector.broadcast %59 : vector<1x128xf32> to vector<16x128xf32>
      %61 = arith.addf %58, %60 : vector<16x128xf32>
      %c0_39 = arith.constant 0 : index
      %c0_40 = arith.constant 0 : index
      %62 = vector.load %arg11[%c0_39, %c0_40] : memref<16x128xf32, #tpu.memory_space<vmem>>, vector<16x128xf32>
      tpu.vector_store %arg11[%c0_39, %c0_40], %61 {strides = array<i32>} : memref<16x128xf32, #tpu.memory_space<vmem>>, vector<16x128xf32>,
    } else {
    }
    return
  }
  func.func @transform_0(%arg0: i32) -> i32 {
    %c0_i32 = arith.constant 0 : i32
    %c0_i32_0 = arith.constant 0 : i32
    return %c0_i32 : i32
  }
  func.func @transform_1(%arg0: i32) -> (i32, i32) {
    %c0_i32 = arith.constant 0 : i32
    %c0_i32_0 = arith.constant 0 : i32
    %c0_i32_1 = arith.constant 0 : i32
    return %c0_i32, %c0_i32_0 : i32, i32
  }
  func.func @transform_2(%arg0: i32) -> (i32, i32) {
    %c0_i32 = arith.constant 0 : i32
    %c0_i32_0 = arith.constant 0 : i32
    return %arg0, %c0_i32 : i32, i32
  }
  func.func @transform_3(%arg0: i32) -> (i32, i32) {
    %c0_i32 = arith.constant 0 : i32
    %c0_i32_0 = arith.constant 0 : i32
    return %c0_i32, %arg0 : i32, i32
  }
  func.func @transform_4(%arg0: i32) -> (i32, i32) {
    %c0_i32 = arith.constant 0 : i32
    %c0_i32_0 = arith.constant 0 : i32
    %c0_i32_1 = arith.constant 0 : i32
    return %c0_i32, %c0_i32_0 : i32, i32
  }
  func.func @transform_5(%arg0: i32) -> (i32, i32) {
    %c0_i32 = arith.constant 0 : i32
    %c0_i32_0 = arith.constant 0 : i32
    %c0_i32_1 = arith.constant 0 : i32
    return %c0_i32, %c0_i32_0 : i32, i32
  }
  func.func @transform_6(%arg0: i32) -> (i32, i32) {
    %c0_i32 = arith.constant 0 : i32
    %c0_i32_0 = arith.constant 0 : i32
    %c0_i32_1 = arith.constant 0 : i32
    return %c0_i32, %c0_i32_0 : i32, i32
  }
  func.func @transform_7(%arg0: i32) -> (i32, i32) {
    %c0_i32 = arith.constant 0 : i32
    %c0_i32_0 = arith.constant 0 : i32
    %c0_i32_1 = arith.constant 0 : i32
    return %c0_i32, %c0_i32_0 : i32, i32
  }
  func.func @transform_8(%arg0: i32) -> (i32, i32) {
    %c0_i32 = arith.constant 0 : i32
    %c0_i32_0 = arith.constant 0 : i32
    %c0_i32_1 = arith.constant 0 : i32
    return %c0_i32, %c0_i32_0 : i32, i32
  }
  func.func @transform_9(%arg0: i32) -> (i32, i32) {
    %c0_i32 = arith.constant 0 : i32
    %c0_i32_0 = arith.constant 0 : i32
    %c0_i32_1 = arith.constant 0 : i32
    return %c0_i32, %c0_i32_0 : i32, i32
  }
  func.func @transform_10(%arg0: i32) -> (i32, i32) {
    %c0_i32 = arith.constant 0 : i32
    %c0_i32_0 = arith.constant 0 : i32
    %c0_i32_1 = arith.constant 0 : i32
    return %c0_i32, %c0_i32_0 : i32, i32
  }
}

</mosaic_0001>

<llo_original>
// kernel: gine_layer_forward.1
$region0: #{gine_layer_forward.1}
  #allocation0 [shape = 'u32[]', space=smem, size = 0x4, offset = 0x4, fixed_abs, tag = 'smem constant byte address 0x4 - core index']
  #allocation1 [shape = 'u32[144,128]{1,0:T(1,128)}', space=vmem, size = 0x12000, scoped, tag = 'internal scratch']
  #allocation2 [shape = 'f32[16,128]{1,0:T(8,128)}', space=vmem, size = 0x2000, scoped, tag = 'scratch operand']
  #allocation3 [shape = 'f32[1]{0:T(128)S(6)}', space=smem, size = 0x200, scoped, tag = 'scoped memory for gine_layer_forward.1']
  %s0 = inlined_call_operand.<no memory space> [shape: f32[1], index: 0, kind: input, shape index: {}]
  %s1 = inlined_call_operand.vmem [shape: f32[16,128], index: 1, kind: input, shape index: {}]
  %s2 = inlined_call_operand.vmem [shape: bf16[256,128], index: 2, kind: input, shape index: {}]
  %s3 = inlined_call_operand.vmem [shape: bf16[16,256], index: 3, kind: input, shape index: {}]
  %s4 = inlined_call_operand.vmem [shape: bf16[128,128], index: 4, kind: input, shape index: {}]
  %s5 = inlined_call_operand.vmem [shape: bf16[128,128], index: 5, kind: input, shape index: {}]
  %s6 = inlined_call_operand.vmem [shape: f32[1,128], index: 6, kind: input, shape index: {}]
  %s7 = inlined_call_operand.vmem [shape: f32[1,128], index: 7, kind: input, shape index: {}]
  %s8 = inlined_call_operand.vmem [shape: bf16[128,128], index: 8, kind: input, shape index: {}]
  %s9 = inlined_call_operand.vmem [shape: f32[1,128], index: 9, kind: input, shape index: {}]
  %s10 = inlined_call_operand.hbm [shape: f32[16,128], index: 10, kind: output, shape index: {}]
  %s11 = sld [smem:[#allocation0]]
  $region122: #{gine_layer_forward.1} parent=0
    _
  %s13 = ssub.s32 1, %s11
  %s14 = scalar_select 0, %s13, %s11
  %15 = sst [smem:[#allocation3]] %s0
  $region1: #{gine_layer_forward.1} parent=0
    #allocation4 [shape = 'u8[8192]{0}', space=vmem, size = 0x2000, scoped, tag = 'input window, operand 3']
    #allocation5 [shape = 'u8[8192]{0}', space=vmem, size = 0x2000, scoped, tag = 'output window, operand 0, single buffered']
    #allocation6 [shape = 's32[2]{0}', space=sflag, size = 0x8, scoped, tag = 'scoped memory for gine_layer_forward.1']
    %16 = vsyncpa [#allocation6], 0
    loop: start=0, step=1, limit=4
    $region2: #{gine_layer_forward.1} parent=1 // loop_pre_header
      _
    $region3: #{gine_layer_forward.1} parent=1 // loop_header
      %s18 = sphi 0, %s22
      %p19 = scmp.ge.s32.totalorder %s18, 4
      %s26 = sphi 0, %s26
      %s28 = sphi 0, %s26
      %s29 = sphi 0, %s28
      %s43 = sphi 0, %s29
      %s47 = sphi 0, %s47
      %s49 = sphi 0, %s47
      %s50 = sphi 0, %s49
      %s64 = sphi 0, %s50
      %s70 = sphi 0, %s72
      %s73 = sphi 0, %s70
      %s74 = sphi 0, %s73
      %s90 = sphi 0, %s74
      %s96 = sphi 0, %s98
      %s99 = sphi 0, %s96
      %s100 = sphi 0, %s99
      %s116 = sphi 0, %s100
      %s120 = sphi 0, %s120
      %s122 = sphi 0, %s120
      %s123 = sphi 0, %s122
      %s137 = sphi 0, %s123
      %s141 = sphi 0, %s141
      %s143 = sphi 0, %s141
      %s144 = sphi 0, %s143
      %s158 = sphi 0, %s144
      %s162 = sphi 0, %s162
      %s164 = sphi 0, %s162
      %s165 = sphi 0, %s164
      %s179 = sphi 0, %s165
      %s183 = sphi 0, %s183
      %s185 = sphi 0, %s183
      %s186 = sphi 0, %s185
      %s200 = sphi 0, %s186
      %s204 = sphi 0, %s204
      %s206 = sphi 0, %s204
      %s207 = sphi 0, %s206
      %s221 = sphi 0, %s207
      %s225 = sphi 0, %s225
      %s227 = sphi 0, %s225
      %s228 = sphi 0, %s227
      %s242 = sphi 0, %s228
      %s246 = sphi 0, %s246
      %s248 = sphi 0, %s246
      %s249 = sphi 0, %s248
      %s263 = sphi 0, %s249
    $region4: #{gine_layer_forward.1} parent=1 // loop_header_branch
      %21 = sbr.rel (%p19) target = $region8
    $region5: #{gine_layer_forward.1} parent=1 // loop_body
      %s23 = ssub.s32 %s18, 1
      %s24 = ssub.s32 %s18, 2
      %s25 = sadd.s32 %s18, 1
      %s27 = sadd.s32 %s26, 1
      %p30 = scmp.eq.s32.totalorder %s18, 1
      %p31 = scmp.ne.s32.totalorder %s26, %s28
      %p32 = scmp.eq.s32.totalorder %s18, 0
      %p33 = por %p31, %p32
      %p34 = scmp.ne.s32.totalorder %s26, %s28
      %p35 = scmp.eq.s32.totalorder %s23, 1
      %p36 = por %p34, %p35
      %p37 = scmp.ne.s32.totalorder %s28, %s29
      %p38 = scmp.eq.s32.totalorder %s23, 0
      %p39 = por %p37, %p38
      %p40 = scmp.ne.s32.totalorder %s28, %s29
      %p41 = scmp.eq.s32.totalorder %s24, 1
      %p42 = por %p40, %p41
      %p44 = scmp.ne.s32.totalorder %s29, %s43
      %p45 = scmp.eq.s32.totalorder %s24, 0
      %p46 = por %p44, %p45
      %s48 = sadd.s32 %s47, 1
      %p51 = scmp.eq.s32.totalorder %s18, 1
      %p52 = scmp.ne.s32.totalorder %s47, %s49
      %p53 = scmp.eq.s32.totalorder %s18, 0
      %p54 = por %p52, %p53
      %p55 = scmp.ne.s32.totalorder %s47, %s49
      %p56 = scmp.eq.s32.totalorder %s23, 1
      %p57 = por %p55, %p56
      %p58 = scmp.ne.s32.totalorder %s49, %s50
      %p59 = scmp.eq.s32.totalorder %s23, 0
      %p60 = por %p58, %p59
      %p61 = scmp.ne.s32.totalorder %s49, %s50
      %p62 = scmp.eq.s32.totalorder %s24, 1
      %p63 = por %p61, %p62
      %p65 = scmp.ne.s32.totalorder %s50, %s64
      %p66 = scmp.eq.s32.totalorder %s24, 0
      %p67 = por %p65, %p66
      %s68 = ssub.s32 %s18, %s25
      %p69 = scmp.eq.s32.totalorder %s68, 0
      %s71 = sadd.s32 %s70, 1
      %s72 = scalar_select %p69, %s70, %s71
      %p75 = pneg %p69
      %p76 = scmp.eq.s32.totalorder %s18, 1
      %p77 = por %p75, %p76
      %p78 = scmp.ne.s32.totalorder %s70, %s73
      %p79 = scmp.eq.s32.totalorder %s18, 0
      %p80 = por %p78, %p79
      %p81 = scmp.ne.s32.totalorder %s70, %s73
      %p82 = scmp.eq.s32.totalorder %s23, 1
      %p83 = por %p81, %p82
      %p84 = scmp.ne.s32.totalorder %s73, %s74
      %p85 = scmp.eq.s32.totalorder %s23, 0
      %p86 = por %p84, %p85
      %p87 = scmp.ne.s32.totalorder %s73, %s74
      %p88 = scmp.eq.s32.totalorder %s24, 1
      %p89 = por %p87, %p88
      %p91 = scmp.ne.s32.totalorder %s74, %s90
      %p92 = scmp.eq.s32.totalorder %s24, 0
      %p93 = por %p91, %p92
      %s94 = ssub.s32 %s18, %s25
      %p95 = scmp.eq.s32.totalorder %s94, 0
      %s97 = sadd.s32 %s96, 1
      %s98 = scalar_select %p95, %s96, %s97
      %p101 = pneg %p95
      %p102 = scmp.eq.s32.totalorder %s18, 1
      %p103 = por %p101, %p102
      %p104 = scmp.ne.s32.totalorder %s96, %s99
      %p105 = scmp.eq.s32.totalorder %s18, 0
      %p106 = por %p104, %p105
      %p107 = scmp.ne.s32.totalorder %s96, %s99
      %p108 = scmp.eq.s32.totalorder %s23, 1
      %p109 = por %p107, %p108
      %p110 = scmp.ne.s32.totalorder %s99, %s100
      %p111 = scmp.eq.s32.totalorder %s23, 0
      %p112 = por %p110, %p111
      %p113 = scmp.ne.s32.totalorder %s99, %s100
      %p114 = scmp.eq.s32.totalorder %s24, 1
      %p115 = por %p113, %p114
      %p117 = scmp.ne.s32.totalorder %s100, %s116
      %p118 = scmp.eq.s32.totalorder %s24, 0
      %p119 = por %p117, %p118
      %s121 = sadd.s32 %s120, 1
      %p124 = scmp.eq.s32.totalorder %s18, 1
      %p125 = scmp.ne.s32.totalorder %s120, %s122
      %p126 = scmp.eq.s32.totalorder %s18, 0
      %p127 = por %p125, %p126
      %p128 = scmp.ne.s32.totalorder %s120, %s122
      %p129 = scmp.eq.s32.totalorder %s23, 1
      %p130 = por %p128, %p129
      %p131 = scmp.ne.s32.totalorder %s122, %s123
      %p132 = scmp.eq.s32.totalorder %s23, 0
      %p133 = por %p131, %p132
      %p134 = scmp.ne.s32.totalorder %s122, %s123
      %p135 = scmp.eq.s32.totalorder %s24, 1
      %p136 = por %p134, %p135
      %p138 = scmp.ne.s32.totalorder %s123, %s137
      %p139 = scmp.eq.s32.totalorder %s24, 0
      %p140 = por %p138, %p139
      %s142 = sadd.s32 %s141, 1
      %p145 = scmp.eq.s32.totalorder %s18, 1
      %p146 = scmp.ne.s32.totalorder %s141, %s143
      %p147 = scmp.eq.s32.totalorder %s18, 0
      %p148 = por %p146, %p147
      %p149 = scmp.ne.s32.totalorder %s141, %s143
      %p150 = scmp.eq.s32.totalorder %s23, 1
      %p151 = por %p149, %p150
      %p152 = scmp.ne.s32.totalorder %s143, %s144
      %p153 = scmp.eq.s32.totalorder %s23, 0
      %p154 = por %p152, %p153
      %p155 = scmp.ne.s32.totalorder %s143, %s144
      %p156 = scmp.eq.s32.totalorder %s24, 1
      %p157 = por %p155, %p156
      %p159 = scmp.ne.s32.totalorder %s144, %s158
      %p160 = scmp.eq.s32.totalorder %s24, 0
      %p161 = por %p159, %p160
      %s163 = sadd.s32 %s162, 1
      %p166 = scmp.eq.s32.totalorder %s18, 1
      %p167 = scmp.ne.s32.totalorder %s162, %s164
      %p168 = scmp.eq.s32.totalorder %s18, 0
      %p169 = por %p167, %p168
      %p170 = scmp.ne.s32.totalorder %s162, %s164
      %p171 = scmp.eq.s32.totalorder %s23, 1
      %p172 = por %p170, %p171
      %p173 = scmp.ne.s32.totalorder %s164, %s165
      %p174 = scmp.eq.s32.totalorder %s23, 0
      %p175 = por %p173, %p174
      %p176 = scmp.ne.s32.totalorder %s164, %s165
      %p177 = scmp.eq.s32.totalorder %s24, 1
      %p178 = por %p176, %p177
      %p180 = scmp.ne.s32.totalorder %s165, %s179
      %p181 = scmp.eq.s32.totalorder %s24, 0
      %p182 = por %p180, %p181
      %s184 = sadd.s32 %s183, 1
      %p187 = scmp.eq.s32.totalorder %s18, 1
      %p188 = scmp.ne.s32.totalorder %s183, %s185
      %p189 = scmp.eq.s32.totalorder %s18, 0
      %p190 = por %p188, %p189
      %p191 = scmp.ne.s32.totalorder %s183, %s185
      %p192 = scmp.eq.s32.totalorder %s23, 1
      %p193 = por %p191, %p192
      %p194 = scmp.ne.s32.totalorder %s185, %s186
      %p195 = scmp.eq.s32.totalorder %s23, 0
      %p196 = por %p194, %p195
      %p197 = scmp.ne.s32.totalorder %s185, %s186
      %p198 = scmp.eq.s32.totalorder %s24, 1
      %p199 = por %p197, %p198
      %p201 = scmp.ne.s32.totalorder %s186, %s200
      %p202 = scmp.eq.s32.totalorder %s24, 0
      %p203 = por %p201, %p202
      %s205 = sadd.s32 %s204, 1
      %p208 = scmp.eq.s32.totalorder %s18, 1
      %p209 = scmp.ne.s32.totalorder %s204, %s206
      %p210 = scmp.eq.s32.totalorder %s18, 0
      %p211 = por %p209, %p210
      %p212 = scmp.ne.s32.totalorder %s204, %s206
      %p213 = scmp.eq.s32.totalorder %s23, 1
      %p214 = por %p212, %p213
      %p215 = scmp.ne.s32.totalorder %s206, %s207
      %p216 = scmp.eq.s32.totalorder %s23, 0
      %p217 = por %p215, %p216
      %p218 = scmp.ne.s32.totalorder %s206, %s207
      %p219 = scmp.eq.s32.totalorder %s24, 1
      %p220 = por %p218, %p219
      %p222 = scmp.ne.s32.totalorder %s207, %s221
      %p223 = scmp.eq.s32.totalorder %s24, 0
      %p224 = por %p222, %p223
      %s226 = sadd.s32 %s225, 1
      %p229 = scmp.eq.s32.totalorder %s18, 1
      %p230 = scmp.ne.s32.totalorder %s225, %s227
      %p231 = scmp.eq.s32.totalorder %s18, 0
      %p232 = por %p230, %p231
      %p233 = scmp.ne.s32.totalorder %s225, %s227
      %p234 = scmp.eq.s32.totalorder %s23, 1
      %p235 = por %p233, %p234
      %p236 = scmp.ne.s32.totalorder %s227, %s228
      %p237 = scmp.eq.s32.totalorder %s23, 0
      %p238 = por %p236, %p237
      %p239 = scmp.ne.s32.totalorder %s227, %s228
      %p240 = scmp.eq.s32.totalorder %s24, 1
      %p241 = por %p239, %p240
      %p243 = scmp.ne.s32.totalorder %s228, %s242
      %p244 = scmp.eq.s32.totalorder %s24, 0
      %p245 = por %p243, %p244
      %s247 = sadd.s32 %s246, 1
      %p250 = scmp.eq.s32.totalorder %s18, 1
      %p251 = scmp.ne.s32.totalorder %s246, %s248
      %p252 = scmp.eq.s32.totalorder %s18, 0
      %p253 = por %p251, %p252
      %p254 = scmp.ne.s32.totalorder %s246, %s248
      %p255 = scmp.eq.s32.totalorder %s23, 1
      %p256 = por %p254, %p255
      %p257 = scmp.ne.s32.totalorder %s248, %s249
      %p258 = scmp.eq.s32.totalorder %s23, 0
      %p259 = por %p257, %p258
      %p260 = scmp.ne.s32.totalorder %s248, %s249
      %p261 = scmp.eq.s32.totalorder %s24, 1
      %p262 = por %p260, %p261
      %p264 = scmp.ne.s32.totalorder %s249, %s263
      %p265 = scmp.eq.s32.totalorder %s24, 0
      %p266 = por %p264, %p265
      %p267 = scmp.le.s32.totalorder 1, %s18
      %p268 = scmp.lt.s32.totalorder %s18, 3
      %p269 = pnand %p267, %p268
      %p270 = pneg %p269
      // Predicated region
      $region9: #{gine_layer_forward.1} parent=5 // pred_check
        _
      $region10: #{gine_layer_forward.1} parent=5 // pred_check_branch
        %272 = sbr.rel (%p269) target = $region12
      $region11: #{gine_layer_forward.1} parent=5 // pred_region
        %s273 = ssub.s32 %s18, 1
        // Predicated region
        $region13: #{gine_layer_forward.1} parent=11 // pred_check
          %p274 = pneg %p39
        $region14: #{gine_layer_forward.1} parent=11 // pred_check_branch
          %276 = sbr.rel (%p274) target = $region16
        $region15: #{gine_layer_forward.1} parent=11 // pred_region
          _
        $region16: #{gine_layer_forward.1} parent=11 // pred_fallthru
          _
        // Predicated region
        $region17: #{gine_layer_forward.1} parent=11 // pred_check
          %p277 = pneg %p60
        $region18: #{gine_layer_forward.1} parent=11 // pred_check_branch
          %279 = sbr.rel (%p277) target = $region20
        $region19: #{gine_layer_forward.1} parent=11 // pred_region
          _
        $region20: #{gine_layer_forward.1} parent=11 // pred_fallthru
          _
        // Predicated region
        $region21: #{gine_layer_forward.1} parent=11 // pred_check
          %p280 = pneg %p133
        $region22: #{gine_layer_forward.1} parent=11 // pred_check_branch
          %282 = sbr.rel (%p280) target = $region24
        $region23: #{gine_layer_forward.1} parent=11 // pred_region
          _
        $region24: #{gine_layer_forward.1} parent=11 // pred_fallthru
          _
        // Predicated region
        $region25: #{gine_layer_forward.1} parent=11 // pred_check
          %p283 = pneg %p154
        $region26: #{gine_layer_forward.1} parent=11 // pred_check_branch
          %285 = sbr.rel (%p283) target = $region28
        $region27: #{gine_layer_forward.1} parent=11 // pred_region
          _
        $region28: #{gine_layer_forward.1} parent=11 // pred_fallthru
          _
        // Predicated region
        $region29: #{gine_layer_forward.1} parent=11 // pred_check
          %p286 = pneg %p175
        $region30: #{gine_layer_forward.1} parent=11 // pred_check_branch
          %288 = sbr.rel (%p286) target = $region32
        $region31: #{gine_layer_forward.1} parent=11 // pred_region
          _
        $region32: #{gine_layer_forward.1} parent=11 // pred_fallthru
          _
        // Predicated region
        $region33: #{gine_layer_forward.1} parent=11 // pred_check
          %p289 = pneg %p196
        $region34: #{gine_layer_forward.1} parent=11 // pred_check_branch
          %291 = sbr.rel (%p289) target = $region36
        $region35: #{gine_layer_forward.1} parent=11 // pred_region
          _
        $region36: #{gine_layer_forward.1} parent=11 // pred_fallthru
          _
        // Predicated region
        $region37: #{gine_layer_forward.1} parent=11 // pred_check
          %p292 = pneg %p217
        $region38: #{gine_layer_forward.1} parent=11 // pred_check_branch
          %294 = sbr.rel (%p292) target = $region40
        $region39: #{gine_layer_forward.1} parent=11 // pred_region
          _
        $region40: #{gine_layer_forward.1} parent=11 // pred_fallthru
          _
        // Predicated region
        $region41: #{gine_layer_forward.1} parent=11 // pred_check
          %p295 = pneg %p238
        $region42: #{gine_layer_forward.1} parent=11 // pred_check_branch
          %297 = sbr.rel (%p295) target = $region44
        $region43: #{gine_layer_forward.1} parent=11 // pred_region
          _
        $region44: #{gine_layer_forward.1} parent=11 // pred_fallthru
          _
      $region12: #{gine_layer_forward.1} parent=5 // pred_fallthru
        _
      %p298 = scmp.lt.s32.totalorder %s18, 2
      // Predicated region
      $region45: #{gine_layer_forward.1} parent=5 // pred_check
        %p299 = pneg %p298
      $region46: #{gine_layer_forward.1} parent=5 // pred_check_branch
        %301 = sbr.rel (%p299) target = $region48
      $region47: #{gine_layer_forward.1} parent=5 // pred_region
        // Predicated region
        $region49: #{gine_layer_forward.1} parent=47 // pred_check
          %p302 = pneg %p80
        $region50: #{gine_layer_forward.1} parent=47 // pred_check_branch
          %304 = sbr.rel (%p302) target = $region52
        $region51: #{gine_layer_forward.1} parent=47 // pred_region
          %s305 = smul.u32 16, %s18
          %p306 = scmp.lt.s32.totalorder %s305, 31
          %s307 = scalar_select %p306, %s305, 31
          %s308 = smul.addr %s307, 4
          %s309 = scalar_lea.vmem %s2, %s308
          %s310 = smul.u32 16, %s18
        $region52: #{gine_layer_forward.1} parent=47 // pred_fallthru
          _
        // Predicated region
        $region53: #{gine_layer_forward.1} parent=47 // pred_check
          %p311 = pneg %p106
        $region54: #{gine_layer_forward.1} parent=47 // pred_check_branch
          %313 = sbr.rel (%p311) target = $region56
        $region55: #{gine_layer_forward.1} parent=47 // pred_region
          %s314 = sand.u32 %s96, 1
          %s315 = sand.u32 %s96, 1
          %s316 = smul.addr %s315, 8
          %s317 = scalar_lea.vmem [#allocation4], %s316
          %s318 = smul.addr %s18, 4
          %s319 = scalar_lea.vmem %s3, %s318
          // Predicated region
          $region57: #{gine_layer_forward.1} parent=55 // pred_check
            _
          $region58: #{gine_layer_forward.1} parent=55 // pred_check_branch
            %321 = sbr.rel (0) target = $region60
          $region59: #{gine_layer_forward.1} parent=55 // pred_region
            // Predicated region
            $region61: #{gine_layer_forward.1} parent=59 // pred_check
              _
            $region62: #{gine_layer_forward.1} parent=59 // pred_check_branch
              %323 = sbr.rel target = $region64
            $region63: #{gine_layer_forward.1} parent=59 // pred_region
              // Predicated region
              $region76: #{gine_layer_forward.1} parent=63 // pred_check
                _
              $region77: #{gine_layer_forward.1} parent=63 // pred_check_branch
                %340 = sbr.rel (0) target = $region79
              $region78: #{gine_layer_forward.1} parent=63 // pred_region
                loop: start=0, step=1, limit=1
                $region80: #{gine_layer_forward.1} parent=78 // loop_pre_header
                  _
                $region81: #{gine_layer_forward.1} parent=78 // loop_header
                  %s342 = sphi 0, %s346
                  %p343 = scmp.ge.s32.totalorder %s342, 1
                  %s347 = sphi %s319, %s319
                  %s348 = sphi %s317, %s317
                $region82: #{gine_layer_forward.1} parent=78 // loop_header_branch
                  %345 = sbr.rel (%p343) target = $region86
                $region83: #{gine_layer_forward.1} parent=78 // loop_body
                  _
                $region84: #{gine_layer_forward.1} parent=78 // loop_footer
                  %s346 = sadd.s32 1, %s342
                $region85: #{gine_layer_forward.1} parent=78 // loop_footer_branch
                  %341 = sbr.rel target = $region81
                $region86: #{gine_layer_forward.1} parent=78 // loop_exit
                  _
                loop: start=0, step=1, limit=1
                $region87: #{gine_layer_forward.1} parent=78 // loop_pre_header
                  _
                $region88: #{gine_layer_forward.1} parent=78 // loop_header
                  %s351 = sphi 0, %s355
                  %p352 = scmp.ge.s32.totalorder %s351, 1
                  %s356 = sphi %s319, %s319
                  %s357 = sphi %s317, %s317
                $region89: #{gine_layer_forward.1} parent=78 // loop_header_branch
                  %354 = sbr.rel (%p352) target = $region93
                $region90: #{gine_layer_forward.1} parent=78 // loop_body
                  %v358 = vld [vmem:[%s356] sm:$0xf]
                  %359 = vst [vmem:[%s357] sm:$0xf] %v358
                  %v360 = vld [vmem:[%s356 + $0x8] sm:$0xf]
                  %361 = vst [vmem:[%s357 + $0x4] sm:$0xf] %v360
                $region91: #{gine_layer_forward.1} parent=78 // loop_footer
                  %s355 = sadd.s32 1, %s351
                $region92: #{gine_layer_forward.1} parent=78 // loop_footer_branch
                  %350 = sbr.rel target = $region88
                $region93: #{gine_layer_forward.1} parent=78 // loop_exit
                  _
              $region79: #{gine_layer_forward.1} parent=63 // pred_fallthru
                _
            $region64: #{gine_layer_forward.1} parent=59 // pred_fallthru
              _
            // Predicated region
            $region65: #{gine_layer_forward.1} parent=59 // pred_check
              _
            $region66: #{gine_layer_forward.1} parent=59 // pred_check_branch
              %325 = sbr.rel (0) target = $region68
            $region67: #{gine_layer_forward.1} parent=59 // pred_region
              loop: start=0, step=1, limit=1
              $region69: #{gine_layer_forward.1} parent=67 // loop_pre_header
                _
              $region70: #{gine_layer_forward.1} parent=67 // loop_header
                %s328 = sphi 0, %s332
                %p329 = scmp.ge.s32.totalorder %s328, 1
                %s333 = sphi %s319, %s319
                %s334 = sphi %s317, %s317
              $region71: #{gine_layer_forward.1} parent=67 // loop_header_branch
                %331 = sbr.rel (%p329) target = $region75
              $region72: #{gine_layer_forward.1} parent=67 // loop_body
                %v335 = vld [vmem:[%s333] sm:$0xf]
                %336 = vst [vmem:[%s334] sm:$0xf] %v335
                %v337 = vld [vmem:[%s333 + $0x8] sm:$0xf]
                %338 = vst [vmem:[%s334 + $0x4] sm:$0xf] %v337
              $region73: #{gine_layer_forward.1} parent=67 // loop_footer
                %s332 = sadd.s32 1, %s328
              $region74: #{gine_layer_forward.1} parent=67 // loop_footer_branch
                %327 = sbr.rel target = $region70
              $region75: #{gine_layer_forward.1} parent=67 // loop_exit
                _
            $region68: #{gine_layer_forward.1} parent=59 // pred_fallthru
              _
          $region60: #{gine_layer_forward.1} parent=55 // pred_fallthru
            _
          %362 = vnop
        $region56: #{gine_layer_forward.1} parent=47 // pred_fallthru
          _
      $region48: #{gine_layer_forward.1} parent=5 // pred_fallthru
        _
      %p363 = scmp.le.s32.totalorder 1, %s18
      %p364 = scmp.lt.s32.totalorder %s18, 3
      %p365 = pnand %p363, %p364
      %p366 = pneg %p365
      // Predicated region
      $region94: #{gine_layer_forward.1} parent=5 // pred_check
        _
      $region95: #{gine_layer_forward.1} parent=5 // pred_check_branch
        %368 = sbr.rel (%p365) target = $region97
      $region96: #{gine_layer_forward.1} parent=5 // pred_region
        %s369 = ssub.s32 %s18, 1
        %s370 = sand.u32 %s99, 1
        %s371 = sand.u32 %s99, 1
        %s372 = smul.addr %s371, 8
        %s373 = scalar_lea.vmem [#allocation4], %s372
        // Predicated region
        $region98: #{gine_layer_forward.1} parent=96 // pred_check
          %p374 = pneg %p112
        $region99: #{gine_layer_forward.1} parent=96 // pred_check_branch
          %376 = sbr.rel (%p374) target = $region101
        $region100: #{gine_layer_forward.1} parent=96 // pred_region
          _
        $region101: #{gine_layer_forward.1} parent=96 // pred_fallthru
          _
        %p377 = pneg %p39
        %p378 = pneg %p36
        %p379 = pneg %p60
        %p380 = pneg %p57
        %s381 = smul.u32 16, %s23
        %p382 = scmp.lt.s32.totalorder %s381, 31
        %s383 = scalar_select %p382, %s381, 31
        %s384 = smul.addr %s383, 4
        %s385 = scalar_lea.vmem %s2, %s384
        %p386 = pneg %p86
        %p387 = pneg %p83
        %s388 = sand.u32 %s99, 1
        %s389 = sand.u32 %s99, 1
        %s390 = smul.addr %s389, 8
        %s391 = scalar_lea.vmem [#allocation4], %s390
        %p392 = pneg %p112
        %p393 = pneg %p109
        %p394 = pneg %p133
        %p395 = pneg %p130
        %p396 = pneg %p154
        %p397 = pneg %p151
        %p398 = pneg %p175
        %p399 = pneg %p172
        %p400 = pneg %p196
        %p401 = pneg %p193
        %p402 = pneg %p217
        %p403 = pneg %p214
        %p404 = pneg %p238
        %p405 = pneg %p235
        %p406 = pneg %p259
        %p407 = pneg %p256
        %s408 = smul.u32 16, %s23
        %p409 = scmp.lt.s32.totalorder %s408, 31
        %s410 = scalar_select %p409, %s408, 31
        %s411 = smul.addr %s410, 4
        %s412 = scalar_lea.vmem %s2, %s411
        %s413 = smul.u32 16, %s23
        %p415 = scmp.eq.s32.totalorder %s23, 0
        // Predicated region
        $region102: #{gine_layer_forward.1} parent=96 // pred_check
          %p416 = pneg %p415
        $region103: #{gine_layer_forward.1} parent=96 // pred_check_branch
          %418 = sbr.rel (%p416) target = $region105
        $region104: #{gine_layer_forward.1} parent=96 // pred_region
          %419 = vst [vmem:[#allocation2] sm:$0xff] 0.0
          %420 = vst [vmem:[#allocation2 + $0x8] sm:$0xff] 0.0
        $region105: #{gine_layer_forward.1} parent=96 // pred_fallthru
          _
        %v421 = vld [vmem:[%s412] sm:$0xf]
        %v422 = vld [vmem:[%s412 + $0x4] sm:$0xf]
        %v423 = vld [vmem:[%s412 + $0x8] sm:$0xf]
        %v424 = vld [vmem:[%s412 + $0xc] sm:$0xf]
        %v425 = vld [vmem:[%s412 + $0x10] sm:$0xf]
        %v426 = vld [vmem:[%s412 + $0x14] sm:$0xf]
        %v427 = vld [vmem:[%s412 + $0x18] sm:$0xf]
        %v428 = vld [vmem:[%s412 + $0x1c] sm:$0xf]
        %v429 = vld [vmem:[%s412 + $0x20] sm:$0xf]
        %v430 = vld [vmem:[%s412 + $0x24] sm:$0xf]
        %v431 = vld [vmem:[%s412 + $0x28] sm:$0xf]
        %v432 = vld [vmem:[%s412 + $0x2c] sm:$0xf]
        %v433 = vld [vmem:[%s412 + $0x30] sm:$0xf]
        %v434 = vld [vmem:[%s412 + $0x34] sm:$0xf]
        %v435 = vld [vmem:[%s412 + $0x38] sm:$0xf]
        %v436 = vld [vmem:[%s412 + $0x3c] sm:$0xf]
        %v437 = vld [vmem:[%s4] sm:$0xf]
        %v438 = vld [vmem:[%s4 + $0x4] sm:$0xf]
        %v439 = vld [vmem:[%s4 + $0x8] sm:$0xf]
        %v440 = vld [vmem:[%s4 + $0xc] sm:$0xf]
        %v441 = vld [vmem:[%s4 + $0x10] sm:$0xf]
        %v442 = vld [vmem:[%s4 + $0x14] sm:$0xf]
        %v443 = vld [vmem:[%s4 + $0x18] sm:$0xf]
        %v444 = vld [vmem:[%s4 + $0x1c] sm:$0xf]
        %v445 = vld [vmem:[%s4 + $0x20] sm:$0xf]
        %v446 = vld [vmem:[%s4 + $0x24] sm:$0xf]
        %v447 = vld [vmem:[%s4 + $0x28] sm:$0xf]
        %v448 = vld [vmem:[%s4 + $0x2c] sm:$0xf]
        %v449 = vld [vmem:[%s4 + $0x30] sm:$0xf]
        %v450 = vld [vmem:[%s4 + $0x34] sm:$0xf]
        %v451 = vld [vmem:[%s4 + $0x38] sm:$0xf]
        %v452 = vld [vmem:[%s4 + $0x3c] sm:$0xf]
        %v469 = vunpack.c.l.b16 %v421
        %v470 = vunpack.c.l.b16 %v422
        %v471 = vunpack.c.l.b16 %v423
        %v472 = vunpack.c.l.b16 %v424
        %v473 = vunpack.c.l.b16 %v425
        %v474 = vunpack.c.l.b16 %v426
        %v475 = vunpack.c.l.b16 %v427
        %v476 = vunpack.c.l.b16 %v428
        %v477 = vunpack.c.l.b16 %v429
        %v478 = vunpack.c.l.b16 %v430
        %v479 = vunpack.c.l.b16 %v431
        %v480 = vunpack.c.l.b16 %v432
        %v481 = vunpack.c.l.b16 %v433
        %v482 = vunpack.c.l.b16 %v434
        %v483 = vunpack.c.l.b16 %v435
        %v484 = vunpack.c.l.b16 %v436
        %v485 = vpack.c.b16 %v470, %v469
        %v486 = vpack.c.b16 %v472, %v471
        %v487 = vpack.c.b16 %v474, %v473
        %v488 = vpack.c.b16 %v476, %v475
        %v489 = vpack.c.b16 %v478, %v477
        %v490 = vpack.c.b16 %v480, %v479
        %v491 = vpack.c.b16 %v482, %v481
        %v492 = vpack.c.b16 %v484, %v483
        %v517 = vunpack.c.l.b16 %v437
        %v518 = vunpack.c.l.b16 %v438
        %v519 = vunpack.c.l.b16 %v439
        %v520 = vunpack.c.l.b16 %v440
        %v521 = vunpack.c.l.b16 %v441
        %v522 = vunpack.c.l.b16 %v442
        %v523 = vunpack.c.l.b16 %v443
        %v524 = vunpack.c.l.b16 %v444
        %v525 = vunpack.c.l.b16 %v445
        %v526 = vunpack.c.l.b16 %v446
        %v527 = vunpack.c.l.b16 %v447
        %v528 = vunpack.c.l.b16 %v448
        %v529 = vunpack.c.l.b16 %v449
        %v530 = vunpack.c.l.b16 %v450
        %v531 = vunpack.c.l.b16 %v451
        %v532 = vunpack.c.l.b16 %v452
        %v533 = vpack.c.b16 %v518, %v517
        %v534 = vpack.c.b16 %v520, %v519
        %v535 = vpack.c.b16 %v522, %v521
        %v536 = vpack.c.b16 %v524, %v523
        %v537 = vpack.c.b16 %v526, %v525
        %v538 = vpack.c.b16 %v528, %v527
        %v539 = vpack.c.b16 %v530, %v529
        %v540 = vpack.c.b16 %v532, %v531
        %549 = vmatprep.subr.bf16.mxu0 0
        %550 = vmatpush1.bf16.msra.mxu0 %v533
        %551 = vmatprep.subr.bf16.mxu0 0
        %552 = vmatpush1.bf16.msra.mxu0 %v534
        %553 = vmatprep.subr.bf16.mxu0 0
        %554 = vmatpush1.bf16.msra.mxu0 %v535
        %555 = vmatprep.subr.bf16.mxu0 0
        %556 = vmatpush1.bf16.msra.mxu0 %v536
        %557 = vmatprep.subr.bf16.mxu0 0
        %558 = vmatpush1.bf16.msra.mxu0 %v537
        %559 = vmatprep.subr.bf16.mxu0 0
        %560 = vmatpush1.bf16.msra.mxu0 %v538
        %561 = vmatprep.subr.bf16.mxu0 0
        %562 = vmatpush1.bf16.msra.mxu0 %v539
        %563 = vmatprep.subr.bf16.mxu0 0
        %564 = vmatpush1.bf16.msra.mxu0 %v540
        %565 = vmatprep.subr.bf16.mxu0 0
        %566 = vmatpush1.bf16.msra.mxu0 0
        %567 = vmatprep.subr.bf16.mxu0 0
        %568 = vmatpush1.bf16.msra.mxu0 0
        %569 = vmatprep.subr.bf16.mxu0 0
        %570 = vmatpush1.bf16.msra.mxu0 0
        %571 = vmatprep.subr.bf16.mxu0 0
        %572 = vmatpush1.bf16.msra.mxu0 0
        %573 = vmatprep.subr.bf16.mxu0 0
        %574 = vmatpush1.bf16.msra.mxu0 0
        %575 = vmatprep.subr.bf16.mxu0 0
        %576 = vmatpush1.bf16.msra.mxu0 0
        %577 = vmatprep.subr.bf16.mxu0 0
        %578 = vmatpush1.bf16.msra.mxu0 0
        %579 = vmatprep.subr.bf16.mxu0 0
        %580 = vmatpush1.bf16.msra.mxu0 0
        %581 = vmatprep.mubr.bf16.mxu0 0
        %582 = vmatmul.mubr.bf16.gmra.mrb[0].mxu0 %v485
        %v583 = vpop.f32.mrb[0].mxu0
        %v584 = vadd.f32 0.0, %v583
        %v585 = vpop.f32.mrb[0].mxu0
        %v586 = vpop.f32.mrb[0].mxu0
        %v587 = vadd.f32 0.0, %v586
        %v588 = vpop.f32.mrb[0].mxu0
        %589 = vmatprep.mubr.bf16.mxu0 0
        %590 = vmatmul.mubr.bf16.gmra.mrb[0].mxu0 %v486
        %v591 = vpop.f32.mrb[0].mxu0
        %v592 = vadd.f32 0.0, %v591
        %v593 = vpop.f32.mrb[0].mxu0
        %v594 = vpop.f32.mrb[0].mxu0
        %v595 = vadd.f32 0.0, %v594
        %v596 = vpop.f32.mrb[0].mxu0
        %597 = vmatprep.mubr.bf16.mxu0 0
        %598 = vmatmul.mubr.bf16.gmra.mrb[0].mxu0 %v487
        %v599 = vpop.f32.mrb[0].mxu0
        %v600 = vadd.f32 0.0, %v599
        %v601 = vpop.f32.mrb[0].mxu0
        %v602 = vpop.f32.mrb[0].mxu0
        %v603 = vadd.f32 0.0, %v602
        %v604 = vpop.f32.mrb[0].mxu0
        %605 = vmatprep.mubr.bf16.mxu0 0
        %606 = vmatmul.mubr.bf16.gmra.mrb[0].mxu0 %v488
        %v607 = vpop.f32.mrb[0].mxu0
        %v608 = vadd.f32 0.0, %v607
        %v609 = vpop.f32.mrb[0].mxu0
        %v610 = vpop.f32.mrb[0].mxu0
        %v611 = vadd.f32 0.0, %v610
        %v612 = vpop.f32.mrb[0].mxu0
        %613 = vmatprep.mubr.bf16.mxu0 0
        %614 = vmatmul.mubr.bf16.gmra.mrb[0].mxu0 %v489
        %v615 = vpop.f32.mrb[0].mxu0
        %v616 = vadd.f32 0.0, %v615
        %v617 = vpop.f32.mrb[0].mxu0
        %v618 = vpop.f32.mrb[0].mxu0
        %v619 = vadd.f32 0.0, %v618
        %v620 = vpop.f32.mrb[0].mxu0
        %621 = vmatprep.mubr.bf16.mxu0 0
        %622 = vmatmul.mubr.bf16.gmra.mrb[0].mxu0 %v490
        %v623 = vpop.f32.mrb[0].mxu0
        %v624 = vadd.f32 0.0, %v623
        %v625 = vpop.f32.mrb[0].mxu0
        %v626 = vpop.f32.mrb[0].mxu0
        %v627 = vadd.f32 0.0, %v626
        %v628 = vpop.f32.mrb[0].mxu0
        %629 = vmatprep.mubr.bf16.mxu0 0
        %630 = vmatmul.mubr.bf16.gmra.mrb[0].mxu0 %v491
        %v631 = vpop.f32.mrb[0].mxu0
        %v632 = vadd.f32 0.0, %v631
        %v633 = vpop.f32.mrb[0].mxu0
        %v634 = vpop.f32.mrb[0].mxu0
        %v635 = vadd.f32 0.0, %v634
        %v636 = vpop.f32.mrb[0].mxu0
        %637 = vmatprep.mubr.bf16.mxu0 0
        %638 = vmatmul.mubr.bf16.gmra.mrb[0].mxu0 %v492
        %v639 = vpop.f32.mrb[0].mxu0
        %v640 = vadd.f32 0.0, %v639
        %v641 = vpop.f32.mrb[0].mxu0
        %v642 = vpop.f32.mrb[0].mxu0
        %v643 = vadd.f32 0.0, %v642
        %v644 = vpop.f32.mrb[0].mxu0
        %645 = vdwg.mxu0
        %v646 = vmax.f32 %v584, 0.0
        %v647 = vmax.f32 %v587, 0.0
        %v648 = vmax.f32 %v592, 0.0
        %v649 = vmax.f32 %v595, 0.0
        %v650 = vmax.f32 %v600, 0.0
        %v651 = vmax.f32 %v603, 0.0
        %v652 = vmax.f32 %v608, 0.0
        %v653 = vmax.f32 %v611, 0.0
        %v654 = vmax.f32 %v616, 0.0
        %v655 = vmax.f32 %v619, 0.0
        %v656 = vmax.f32 %v624, 0.0
        %v657 = vmax.f32 %v627, 0.0
        %v658 = vmax.f32 %v632, 0.0
        %v659 = vmax.f32 %v635, 0.0
        %v660 = vmax.f32 %v640, 0.0
        %v661 = vmax.f32 %v643, 0.0
        %v662 = vld [vmem:[#allocation2] sm:$0xff]
        %v663 = vld [vmem:[#allocation2 + $0x8] sm:$0xff]
        %v664 = vld [vmem:[%s373] sm:$0xf]
        %v665 = vld [vmem:[%s373 + $0x4] sm:$0xf]
        %v666 = vpack.c.bf16 %v647, %v646
        %v667 = vpack.c.bf16 %v649, %v648
        %v668 = vpack.c.bf16 %v651, %v650
        %v669 = vpack.c.bf16 %v653, %v652
        %v670 = vpack.c.bf16 %v655, %v654
        %v671 = vpack.c.bf16 %v657, %v656
        %v672 = vpack.c.bf16 %v659, %v658
        %v673 = vpack.c.bf16 %v661, %v660
        %v676 = vunpack.c.l.b16 %v664
        %v677 = vunpack.c.l.b16 %v665
        %v678 = vpack.c.b16 %v677, %v676
        %680 = vmatprep.subr.bf16.mxu0 0
        %681 = vmatpush1.bf16.msra.mxu0 %v666
        %682 = vmatprep.subr.bf16.mxu0 0
        %683 = vmatpush1.bf16.msra.mxu0 %v667
        %684 = vmatprep.subr.bf16.mxu0 0
        %685 = vmatpush1.bf16.msra.mxu0 %v668
        %686 = vmatprep.subr.bf16.mxu0 0
        %687 = vmatpush1.bf16.msra.mxu0 %v669
        %688 = vmatprep.subr.bf16.mxu0 0
        %689 = vmatpush1.bf16.msra.mxu0 %v670
        %690 = vmatprep.subr.bf16.mxu0 0
        %691 = vmatpush1.bf16.msra.mxu0 %v671
        %692 = vmatprep.subr.bf16.mxu0 0
        %693 = vmatpush1.bf16.msra.mxu0 %v672
        %694 = vmatprep.subr.bf16.mxu0 0
        %695 = vmatpush1.bf16.msra.mxu0 %v673
        %696 = vmatprep.subr.bf16.mxu0 0
        %697 = vmatpush1.bf16.msra.mxu0 0
        %698 = vmatprep.subr.bf16.mxu0 0
        %699 = vmatpush1.bf16.msra.mxu0 0
        %700 = vmatprep.subr.bf16.mxu0 0
        %701 = vmatpush1.bf16.msra.mxu0 0
        %702 = vmatprep.subr.bf16.mxu0 0
        %703 = vmatpush1.bf16.msra.mxu0 0
        %704 = vmatprep.subr.bf16.mxu0 0
        %705 = vmatpush1.bf16.msra.mxu0 0
        %706 = vmatprep.subr.bf16.mxu0 0
        %707 = vmatpush1.bf16.msra.mxu0 0
        %708 = vmatprep.subr.bf16.mxu0 0
        %709 = vmatpush1.bf16.msra.mxu0 0
        %710 = vmatprep.subr.bf16.mxu0 0
        %711 = vmatpush1.bf16.msra.mxu0 0
        %712 = vmatprep.mubr.bf16.mxu0 0
        %713 = vmatmul.mubr.bf16.gmra.mrb[0].mxu0 %v678
        %v714 = vpop.f32.mrb[0].mxu0
        %v715 = vadd.f32 0.0, %v714
        %v716 = vpop.f32.mrb[0].mxu0
        %v717 = vpop.f32.mrb[0].mxu0
        %v718 = vadd.f32 0.0, %v717
        %v719 = vpop.f32.mrb[0].mxu0
        %720 = vdwg.mxu0
        %v721 = vadd.f32 %v662, %v715
        %v722 = vadd.f32 %v663, %v718
        %723 = vst [vmem:[#allocation2] sm:$0xff] %v721
        %724 = vst [vmem:[#allocation2 + $0x8] sm:$0xff] %v722
        %p725 = scmp.eq.s32.totalorder %s23, 1
        // Predicated region
        $region106: #{gine_layer_forward.1} parent=96 // pred_check
          %p726 = pneg %p725
        $region107: #{gine_layer_forward.1} parent=96 // pred_check_branch
          %728 = sbr.rel (%p726) target = $region109
        $region108: #{gine_layer_forward.1} parent=96 // pred_region
          %s729 = sld [smem:[#allocation3]]
          %s730 = sadd.f32 %s729, 1.0
          %v731 = vld [vmem:[%s1] sm:$0xff]
          %v732 = vld [vmem:[%s1 + $0x8] sm:$0xff]
          %v733 = vstv %s730
          %v734 = vmul.f32 %v733, %v731
          %v735 = vmul.f32 %v733, %v732
          %v736 = vld [vmem:[#allocation2] sm:$0xff]
          %v737 = vld [vmem:[#allocation2 + $0x8] sm:$0xff]
          %v738 = vadd.f32 %v734, %v736
          %v739 = vadd.f32 %v735, %v737
          %v740 = vpack.c.bf16 %v739, %v738
          %v741 = vld [vmem:[%s5] sm:$0xf]
          %v742 = vld [vmem:[%s5 + $0x4] sm:$0xf]
          %v743 = vld [vmem:[%s5 + $0x8] sm:$0xf]
          %v744 = vld [vmem:[%s5 + $0xc] sm:$0xf]
          %v745 = vld [vmem:[%s5 + $0x10] sm:$0xf]
          %v746 = vld [vmem:[%s5 + $0x14] sm:$0xf]
          %v747 = vld [vmem:[%s5 + $0x18] sm:$0xf]
          %v748 = vld [vmem:[%s5 + $0x1c] sm:$0xf]
          %v749 = vld [vmem:[%s5 + $0x20] sm:$0xf]
          %v750 = vld [vmem:[%s5 + $0x24] sm:$0xf]
          %v751 = vld [vmem:[%s5 + $0x28] sm:$0xf]
          %v752 = vld [vmem:[%s5 + $0x2c] sm:$0xf]
          %v753 = vld [vmem:[%s5 + $0x30] sm:$0xf]
          %v754 = vld [vmem:[%s5 + $0x34] sm:$0xf]
          %v755 = vld [vmem:[%s5 + $0x38] sm:$0xf]
          %v756 = vld [vmem:[%s5 + $0x3c] sm:$0xf]
          %v773 = vunpack.c.l.b16 %v741
          %v774 = vunpack.c.l.b16 %v742
          %v775 = vunpack.c.l.b16 %v743
          %v776 = vunpack.c.l.b16 %v744
          %v777 = vunpack.c.l.b16 %v745
          %v778 = vunpack.c.l.b16 %v746
          %v779 = vunpack.c.l.b16 %v747
          %v780 = vunpack.c.l.b16 %v748
          %v781 = vunpack.c.l.b16 %v749
          %v782 = vunpack.c.l.b16 %v750
          %v783 = vunpack.c.l.b16 %v751
          %v784 = vunpack.c.l.b16 %v752
          %v785 = vunpack.c.l.b16 %v753
          %v786 = vunpack.c.l.b16 %v754
          %v787 = vunpack.c.l.b16 %v755
          %v788 = vunpack.c.l.b16 %v756
          %v789 = vpack.c.b16 %v774, %v773
          %v790 = vpack.c.b16 %v776, %v775
          %v791 = vpack.c.b16 %v778, %v777
          %v792 = vpack.c.b16 %v780, %v779
          %v793 = vpack.c.b16 %v782, %v781
          %v794 = vpack.c.b16 %v784, %v783
          %v795 = vpack.c.b16 %v786, %v785
          %v796 = vpack.c.b16 %v788, %v787
          %805 = vmatprep.subr.bf16.mxu0 0
          %806 = vmatpush1.bf16.msra.mxu0 %v789
          %807 = vmatprep.subr.bf16.mxu0 0
          %808 = vmatpush1.bf16.msra.mxu0 %v790
          %809 = vmatprep.subr.bf16.mxu0 0
          %810 = vmatpush1.bf16.msra.mxu0 %v791
          %811 = vmatprep.subr.bf16.mxu0 0
          %812 = vmatpush1.bf16.msra.mxu0 %v792
          %813 = vmatprep.subr.bf16.mxu0 0
          %814 = vmatpush1.bf16.msra.mxu0 %v793
          %815 = vmatprep.subr.bf16.mxu0 0
          %816 = vmatpush1.bf16.msra.mxu0 %v794
          %817 = vmatprep.subr.bf16.mxu0 0
          %818 = vmatpush1.bf16.msra.mxu0 %v795
          %819 = vmatprep.subr.bf16.mxu0 0
          %820 = vmatpush1.bf16.msra.mxu0 %v796
          %821 = vmatprep.subr.bf16.mxu0 0
          %822 = vmatpush1.bf16.msra.mxu0 0
          %823 = vmatprep.subr.bf16.mxu0 0
          %824 = vmatpush1.bf16.msra.mxu0 0
          %825 = vmatprep.subr.bf16.mxu0 0
          %826 = vmatpush1.bf16.msra.mxu0 0
          %827 = vmatprep.subr.bf16.mxu0 0
          %828 = vmatpush1.bf16.msra.mxu0 0
          %829 = vmatprep.subr.bf16.mxu0 0
          %830 = vmatpush1.bf16.msra.mxu0 0
          %831 = vmatprep.subr.bf16.mxu0 0
          %832 = vmatpush1.bf16.msra.mxu0 0
          %833 = vmatprep.subr.bf16.mxu0 0
          %834 = vmatpush1.bf16.msra.mxu0 0
          %835 = vmatprep.subr.bf16.mxu0 0
          %836 = vmatpush1.bf16.msra.mxu0 0
          %837 = vmatprep.mubr.bf16.mxu0 0
          %838 = vmatmul.mubr.bf16.gmra.mrb[0].mxu0 %v740
          %v839 = vpop.f32.mrb[0].mxu0
          %v840 = vadd.f32 0.0, %v839
          %v841 = vpop.f32.mrb[0].mxu0
          %v842 = vpop.f32.mrb[0].mxu0
          %v843 = vadd.f32 0.0, %v842
          %v844 = vpop.f32.mrb[0].mxu0
          %845 = vdwg.mxu0
          %v846 = vadd.f32 %v840, %v843
          %v847 = vrot.slane %v846, 4
          %v848 = vadd.f32 %v846, %v847
          %v849 = vrot.slane %v848, 2
          %v850 = vadd.f32 %v848, %v849
          %v851 = vrot.slane %v850, 1
          %v852 = vadd.f32 %v850, %v851
          %v853 = vmul.f32 %v852, 0.0625
          %v854 = vsub.f32 %v840, %v853
          %v855 = vsub.f32 %v843, %v853
          %v856 = vmul.f32 %v854, %v854
          %v857 = vmul.f32 %v855, %v855
          %v858 = vadd.f32 %v856, %v857
          %v859 = vrot.slane %v858, 4
          %v860 = vadd.f32 %v858, %v859
          %v861 = vrot.slane %v860, 2
          %v862 = vadd.f32 %v860, %v861
          %v863 = vrot.slane %v862, 1
          %v864 = vadd.f32 %v862, %v863
          %v865 = vmul.f32 %v853, 0.0
          %v866 = vmul.f32 %v865, %v853
          %v867 = vsub.f32 %v864, %v866
          %v868 = vmul.f32 %v867, 0.0625
          %v869 = vmax.f32 %v868, 0.0
          %v870 = vld [vmem:[%s6] sm:$0x1]
          %v871 = vadd.f32 %v869, 1e-05
          %v872 = vrsqrt.pop %v871
          %v873 = vmul.f32 %v870, %v872
          %v875 = vlaneseq
          %v876 = vshrl.u32 %v875, 7
          %v877 = vsub.s32 0, %v876
          %v878 = vrot.slane %v873, %v877
          %v880 = vmul.f32 %v854, %v878
          %v881 = vmul.f32 %v855, %v878
          %v882 = vld [vmem:[%s7] sm:$0x1]
          %v884 = vlaneseq
          %v885 = vshrl.u32 %v884, 7
          %v886 = vsub.s32 0, %v885
          %v887 = vrot.slane %v882, %v886
          %v889 = vadd.f32 %v880, %v887
          %v890 = vadd.f32 %v881, %v887
          %v891 = vmax.f32 %v889, 0.0
          %v892 = vmax.f32 %v890, 0.0
          %v893 = vpack.c.bf16 %v892, %v891
          %v894 = vld [vmem:[%s8] sm:$0xf]
          %v895 = vld [vmem:[%s8 + $0x4] sm:$0xf]
          %v896 = vld [vmem:[%s8 + $0x8] sm:$0xf]
          %v897 = vld [vmem:[%s8 + $0xc] sm:$0xf]
          %v898 = vld [vmem:[%s8 + $0x10] sm:$0xf]
          %v899 = vld [vmem:[%s8 + $0x14] sm:$0xf]
          %v900 = vld [vmem:[%s8 + $0x18] sm:$0xf]
          %v901 = vld [vmem:[%s8 + $0x1c] sm:$0xf]
          %v902 = vld [vmem:[%s8 + $0x20] sm:$0xf]
          %v903 = vld [vmem:[%s8 + $0x24] sm:$0xf]
          %v904 = vld [vmem:[%s8 + $0x28] sm:$0xf]
          %v905 = vld [vmem:[%s8 + $0x2c] sm:$0xf]
          %v906 = vld [vmem:[%s8 + $0x30] sm:$0xf]
          %v907 = vld [vmem:[%s8 + $0x34] sm:$0xf]
          %v908 = vld [vmem:[%s8 + $0x38] sm:$0xf]
          %v909 = vld [vmem:[%s8 + $0x3c] sm:$0xf]
          %v910 = vld [vmem:[%s9] sm:$0x1]
          %v912 = vlaneseq
          %v913 = vshrl.u32 %v912, 7
          %v914 = vsub.s32 0, %v913
          %v915 = vrot.slane %v910, %v914
          %v933 = vunpack.c.l.b16 %v894
          %v934 = vunpack.c.l.b16 %v895
          %v935 = vunpack.c.l.b16 %v896
          %v936 = vunpack.c.l.b16 %v897
          %v937 = vunpack.c.l.b16 %v898
          %v938 = vunpack.c.l.b16 %v899
          %v939 = vunpack.c.l.b16 %v900
          %v940 = vunpack.c.l.b16 %v901
          %v941 = vunpack.c.l.b16 %v902
          %v942 = vunpack.c.l.b16 %v903
          %v943 = vunpack.c.l.b16 %v904
          %v944 = vunpack.c.l.b16 %v905
          %v945 = vunpack.c.l.b16 %v906
          %v946 = vunpack.c.l.b16 %v907
          %v947 = vunpack.c.l.b16 %v908
          %v948 = vunpack.c.l.b16 %v909
          %v949 = vpack.c.b16 %v934, %v933
          %v950 = vpack.c.b16 %v936, %v935
          %v951 = vpack.c.b16 %v938, %v937
          %v952 = vpack.c.b16 %v940, %v939
          %v953 = vpack.c.b16 %v942, %v941
          %v954 = vpack.c.b16 %v944, %v943
          %v955 = vpack.c.b16 %v946, %v945
          %v956 = vpack.c.b16 %v948, %v947
          %965 = vmatprep.subr.bf16.mxu0 0
          %966 = vmatpush1.bf16.msra.mxu0 %v949
          %967 = vmatprep.subr.bf16.mxu0 0
          %968 = vmatpush1.bf16.msra.mxu0 %v950
          %969 = vmatprep.subr.bf16.mxu0 0
          %970 = vmatpush1.bf16.msra.mxu0 %v951
          %971 = vmatprep.subr.bf16.mxu0 0
          %972 = vmatpush1.bf16.msra.mxu0 %v952
          %973 = vmatprep.subr.bf16.mxu0 0
          %974 = vmatpush1.bf16.msra.mxu0 %v953
          %975 = vmatprep.subr.bf16.mxu0 0
          %976 = vmatpush1.bf16.msra.mxu0 %v954
          %977 = vmatprep.subr.bf16.mxu0 0
          %978 = vmatpush1.bf16.msra.mxu0 %v955
          %979 = vmatprep.subr.bf16.mxu0 0
          %980 = vmatpush1.bf16.msra.mxu0 %v956
          %981 = vmatprep.subr.bf16.mxu0 0
          %982 = vmatpush1.bf16.msra.mxu0 0
          %983 = vmatprep.subr.bf16.mxu0 0
          %984 = vmatpush1.bf16.msra.mxu0 0
          %985 = vmatprep.subr.bf16.mxu0 0
          %986 = vmatpush1.bf16.msra.mxu0 0
          %987 = vmatprep.subr.bf16.mxu0 0
          %988 = vmatpush1.bf16.msra.mxu0 0
          %989 = vmatprep.subr.bf16.mxu0 0
          %990 = vmatpush1.bf16.msra.mxu0 0
          %991 = vmatprep.subr.bf16.mxu0 0
          %992 = vmatpush1.bf16.msra.mxu0 0
          %993 = vmatprep.subr.bf16.mxu0 0
          %994 = vmatpush1.bf16.msra.mxu0 0
          %995 = vmatprep.subr.bf16.mxu0 0
          %996 = vmatpush1.bf16.msra.mxu0 0
          %997 = vmatprep.mubr.bf16.mxu0 0
          %998 = vmatmul.mubr.bf16.gmra.mrb[0].mxu0 %v893
          %v999 = vpop.f32.mrb[0].mxu0
          %v1000 = vadd.f32 %v915, %v999
          %v1001 = vpop.f32.mrb[0].mxu0
          %v1002 = vpop.f32.mrb[0].mxu0
          %v1003 = vadd.f32 %v915, %v1002
          %v1004 = vpop.f32.mrb[0].mxu0
          %1005 = vdwg.mxu0
          %1006 = vst [vmem:[#allocation5] sm:$0xff] %v1000
          %1007 = vst [vmem:[#allocation5 + $0x8] sm:$0xff] %v1003
        $region109: #{gine_layer_forward.1} parent=96 // pred_fallthru
          _
        // Predicated region
        $region110: #{gine_layer_forward.1} parent=96 // pred_check
          %p1008 = pneg %p256
        $region111: #{gine_layer_forward.1} parent=96 // pred_check_branch
          %1010 = sbr.rel (%p1008) target = $region113
        $region112: #{gine_layer_forward.1} parent=96 // pred_region
          %s1012 = ssub.s32 256, 256
          %1013 = vsyncadd [#allocation6], %s1012
          %s1014 = sshll.u32 [#allocation5], 4
          %s1015 = int_to_ptr.vmem [resolvable:$true] %s1014
          %1020 = dma.vmem_to_hbm [thread:$0]  %s1015, 256, %s10, [#allocation6], 128, 128, 8
        $region113: #{gine_layer_forward.1} parent=96 // pred_fallthru
          _
        // Predicated region
        $region114: #{gine_layer_forward.1} parent=96 // pred_check
          %p1021 = pneg %p256
        $region115: #{gine_layer_forward.1} parent=96 // pred_check_branch
          %1023 = sbr.rel (%p1021) target = $region117
        $region116: #{gine_layer_forward.1} parent=96 // pred_region
          %1024 = dma.done [#allocation6], 256
        $region117: #{gine_layer_forward.1} parent=96 // pred_fallthru
          _
      $region97: #{gine_layer_forward.1} parent=5 // pred_fallthru
        _
      %p1025 = scmp.le.s32.totalorder 2, %s18
      // Predicated region
      $region118: #{gine_layer_forward.1} parent=5 // pred_check
        %p1026 = pneg %p1025
      $region119: #{gine_layer_forward.1} parent=5 // pred_check_branch
        %1028 = sbr.rel (%p1026) target = $region121
      $region120: #{gine_layer_forward.1} parent=5 // pred_region
        %s1029 = ssub.s32 %s18, 2
      $region121: #{gine_layer_forward.1} parent=5 // pred_fallthru
        _
    $region6: #{gine_layer_forward.1} parent=1 // loop_footer
      %s22 = sadd.s32 1, %s18
    $region7: #{gine_layer_forward.1} parent=1 // loop_footer_branch
      %17 = sbr.rel target = $region3
    $region8: #{gine_layer_forward.1} parent=1 // loop_exit
      _
    %1030 = vsyncpa [#allocation6], 1
    %s1031 = scalar_lea.sflag [#allocation6], 1
    %1032 = vsyncpa %s1031, 1

</llo_original>
